<compile_context>
chip_gen: v6e
topology: v6e:2x2x1
jax: 0.10.0
libtpu: 0.0.40
codegen_flags: <defaults>
</compile_context>

<pallas_src>
import math
import functools

import jax
import jax.numpy as jnp
from jax.experimental import pallas as pl
from jax.experimental.pallas import tpu as pltpu


def _round_up(x, m):
    return ((x + m - 1) // m) * m


# ---------------------------------------------------------------------------
# Path 1 (default, any vocab): scalar-prefetch DMA gather.  ids in SMEM,
# table stays in HBM, one row-DMA per token into a VMEM scratch tile.
# ---------------------------------------------------------------------------
def _gather_kernel(ids_smem, lut_hbm, out_ref, buf, sem, *, scale, tt, vocab):
    # ids_smem : (n_pad,)   int32  in SMEM (scalar prefetch)
    # lut_hbm  : (vocab, D) f32    raw HBM ref (memory_space=pl.ANY)
    # out_ref  : (tt, D)    f32    auto-pipelined output tile
    # buf      : (tt, D)    f32    VMEM scratch (gather destination)
    # sem      : scalar DMA semaphore shared by all row copies of this tile
    i = pl.program_id(0)
    base = i * tt

    # Issue all row-gather DMAs back to back; they run concurrently on the
    # DMA engine and all signal the same semaphore.
    @pl.loop(0, tt)
    def _(t):
        tok = ids_smem[base + t]
        tok = jnp.minimum(jnp.maximum(tok, 0), vocab - 1)   # clamp: no OOB DMA
        pltpu.make_async_copy(
            lut_hbm.at[pl.ds(tok, 1), :],
            buf.at[pl.ds(t, 1), :],
            sem,
        ).start()

    # Drain: every copy moved the same number of bytes, so waiting `tt` times
    # with a matching descriptor consumes all completions on `sem`.
    @pl.loop(0, tt)
    def _(t):
        pltpu.make_async_copy(
            lut_hbm.at[pl.ds(0, 1), :],
            buf.at[pl.ds(0, 1), :],
            sem,
        ).wait()

    # Scale epilogue stays in-kernel (VPU work hidden under DMA slack).
    out_ref[...] = (buf[...] * scale).astype(out_ref.dtype)


def _gather_forward(ids_flat, lut, scale, tt):
    n_pad = ids_flat.shape[0]
    vocab, d = lut.shape
    grid = (n_pad // tt,)
    return pl.pallas_call(
        functools.partial(_gather_kernel, scale=scale, tt=tt, vocab=vocab),
        out_shape=jax.ShapeDtypeStruct((n_pad, d), lut.dtype),
        grid_spec=pltpu.PrefetchScalarGridSpec(
            num_scalar_prefetch=1,                      # ids -> SMEM
            grid=grid,
            in_specs=[pl.BlockSpec(memory_space=pl.ANY)],   # lut stays in HBM
            out_specs=pl.BlockSpec((tt, d), lambda i, ids: (i, 0)),
            scratch_shapes=[
                pltpu.VMEM((tt, d), lut.dtype),
                pltpu.SemaphoreType.DMA,
            ],
        ),
        compiler_params=pltpu.CompilerParams(
            dimension_semantics=("parallel",)),          # token tiles independent
    )(ids_flat, lut)


# ---------------------------------------------------------------------------
# Path 2 (small vocab <= 2048): one-hot @ lut on the MXU with the full table
# resident in VMEM.  Kept per review guidance for tiny vocabularies only.
# ---------------------------------------------------------------------------
def _onehot_kernel(ids_ref, lut_ref, out_ref, *, scale):
    # ids_ref: (tt, 1) int32, lut_ref: (vocab, D) f32, out_ref: (tt, D) f32
    ids = ids_ref[...]
    tt = ids.shape[0]
    vocab = lut_ref.shape[0]
    col = jax.lax.broadcasted_iota(jnp.int32, (tt, vocab), 1)
    onehot = (ids == col).astype(lut_ref.dtype)          # exact 0/1 values
    emb = jnp.dot(onehot, lut_ref[...], preferred_element_type=jnp.float32)
    out_ref[...] = (emb * scale).astype(out_ref.dtype)


def _onehot_forward(ids_flat, lut, scale, tt):
    n_pad = ids_flat.shape[0]
    vocab, d = lut.shape
    grid = (n_pad // tt,)
    return pl.pallas_call(
        functools.partial(_onehot_kernel, scale=scale),
        out_shape=jax.ShapeDtypeStruct((n_pad, d), lut.dtype),
        grid_spec=pltpu.PrefetchScalarGridSpec(
            num_scalar_prefetch=0,
            grid=grid,
            in_specs=[
                pl.BlockSpec((tt, 1), lambda i: (i, 0)),        # ids tile
                pl.BlockSpec((vocab, d), lambda i: (0, 0)),     # full (small) lut
            ],
            out_specs=pl.BlockSpec((tt, d), lambda i: (i, 0)),
        ),
        compiler_params=pltpu.CompilerParams(
            dimension_semantics=("parallel",)),
    )(ids_flat.reshape(n_pad, 1), lut)


# ---------------------------------------------------------------------------
# Public wrapper: matches Embeddings.forward(x) = lut(x) * sqrt(d_model)
# ---------------------------------------------------------------------------
def embeddings_forward(ids, lut, d_model, *, token_tile=256, method=None):
    """ids: (B, S) int; lut: (vocab, d_model) f32 -> (B, S, d_model) f32."""
    B, S = ids.shape
    vocab, D = lut.shape
    assert D == d_model
    n_tok = B * S

    if method is None:
        method = "onehot" if vocab <= 2048 else "gather"

    # Large token tile (amortize grid-step overhead / fill MXU rows), but no
    # larger than the (8-rounded) token count, and shrunk if ~3 f32 copies of
    # a (tt, D) tile would not fit comfortably in scoped VMEM (v7x safe).
    tt = min(token_tile, _round_up(n_tok, 8))
    while tt > 8 and 3 * tt * D * 4 > 16 * 1024 * 1024:
        tt = max(8, (tt // 2 // 8) * 8)

    n_pad = _round_up(n_tok, tt)
    ids_flat = jnp.ravel(ids).astype(jnp.int32)
    if n_pad != n_tok:
        ids_flat = jnp.pad(ids_flat, (0, n_pad - n_tok))   # pad ids = 0 (valid row)

    scale = math.sqrt(d_model)

    if method == "gather":
        out = _gather_forward(ids_flat, lut, scale, tt)
    elif method == "onehot":
        out = _onehot_forward(ids_flat, lut, scale, tt)
    else:
        raise ValueError(f"unknown method {method!r}")

    return out[:n_tok].reshape(B, S, D)


if __name__ == "__main__":
    # Small shapes consistent with the module's forward.
    d_model = 32
    vocab = 64
    B, S = 2, 8

    key = jax.random.PRNGKey(0)
    k_lut, k_ids = jax.random.split(key)

    # nn.Embedding default init: N(0, 1)
    lut = jax.random.normal(k_lut, (vocab, d_model), dtype=jnp.float32)
    ids = jax.random.randint(k_ids, (B, S), 0, vocab, dtype=jnp.int32)

    ref = jnp.take(lut, ids, axis=0) * math.sqrt(d_model)

    # Default / large-vocab path: HBM row-gather driven by SMEM ids.
    out_gather = embeddings_forward(ids, lut, d_model, method="gather")
    out_gather = jax.block_until_ready(out_gather)
    assert out_gather.shape == (B, S, d_model)
    assert jnp.allclose(out_gather, ref, atol=1e-5, rtol=1e-5)

    # Small-vocab MXU path (auto-selected when vocab <= 2048).
    out_onehot = embeddings_forward(ids, lut, d_model, method="onehot")
    out_onehot = jax.block_until_ready(out_onehot)
    assert jnp.allclose(out_onehot, ref, atol=1e-5, rtol=1e-5)

    print("KERNEL_OK")
</pallas_src>

<mosaic_0001>
module attributes {stable_mosaic.version = 11 : i64} {
  func.func @_gather_kernel(%arg0: i32, %arg1: memref<16xi32, #tpu.memory_space<smem>>, %arg2: memref<64x32xf32, #tpu.memory_space<any>>, %arg3: memref<16x32xf32, #tpu.memory_space<vmem>>, %arg4: memref<16x32xf32, #tpu.memory_space<vmem>>, %arg5: memref<!tpu.dma_semaphore, #tpu.memory_space<semaphore_mem>>) attributes {dimension_semantics = [#tpu.dimension_semantics<parallel>], iteration_bounds = array<i64: 1>, scalar_prefetch = 1 : i64, scratch_operands = 2 : i64, tpu.core_type = #tpu.core_type<tc>, window_params = [{}, {transform_indices = @transform_1, window_bounds = array<i64: 16, 32>}]} {
    %c16_i32 = arith.constant 16 : i32
    %0 = arith.muli %arg0, %c16_i32 : i32
    %c0_i32 = arith.constant 0 : i32
    %c16_i32_0 = arith.constant 16 : i32
    %1 = arith.addi %c0_i32, %c16_i32_0 : i32
    %c1_i32 = arith.constant 1 : i32
    scf.for %arg6 = %c0_i32 to %1 step %c1_i32  : i32 {
      %c1_i32_8 = arith.constant 1 : i32
      %7 = arith.muli %arg6, %c1_i32_8 : i32
      %c0_i32_9 = arith.constant 0 : i32
      %8 = arith.addi %c0_i32_9, %7 : i32
      %9 = arith.addi %0, %8 : i32
      %10 = arith.index_cast %9 : i32 to index
      %11 = memref.load %arg1[%10] : memref<16xi32, #tpu.memory_space<smem>>
      %c0_i32_10 = arith.constant 0 : i32
      %12 = arith.maxsi %11, %c0_i32_10 : i32
      %c63_i32 = arith.constant 63 : i32
      %13 = arith.minsi %12, %c63_i32 : i32
      %c0_i32_11 = arith.constant 0 : i32
      %14 = tpu.memref_slice %arg2[%13, %c0_i32_11] : memref<64x32xf32, #tpu.memory_space<any>> -> memref<1x32xf32, #tpu.memory_space<any>>
      %c0_i32_12 = arith.constant 0 : i32
      %15 = tpu.memref_slice %arg4[%8, %c0_i32_12] : memref<16x32xf32, #tpu.memory_space<vmem>> -> memref<1x32xf32, #tpu.memory_space<vmem>>
      tpu.enqueue_dma source(%14 : memref<1x32xf32, #tpu.memory_space<any>>) target(%15 : memref<1x32xf32, #tpu.memory_space<vmem>>) target_semaphore(%arg5 : memref<!tpu.dma_semaphore, #tpu.memory_space<semaphore_mem>>)
    }
    %c16_i32_1 = arith.constant 16 : i32
    %c0_i32_2 = arith.constant 0 : i32
    %c16_i32_3 = arith.constant 16 : i32
    %2 = arith.addi %c0_i32_2, %c16_i32_3 : i32
    %c1_i32_4 = arith.constant 1 : i32
    scf.for %arg6 = %c0_i32_2 to %2 step %c1_i32_4  : i32 {
      %c0_i32_8 = arith.constant 0 : i32
      %c0_i32_9 = arith.constant 0 : i32
      %7 = tpu.memref_slice %arg2[%c0_i32_8, %c0_i32_9] : memref<64x32xf32, #tpu.memory_space<any>> -> memref<1x32xf32, #tpu.memory_space<any>>
      %c0_i32_10 = arith.constant 0 : i32
      %c0_i32_11 = arith.constant 0 : i32
      %8 = tpu.memref_slice %arg4[%c0_i32_10, %c0_i32_11] : memref<16x32xf32, #tpu.memory_space<vmem>> -> memref<1x32xf32, #tpu.memory_space<vmem>>
      tpu.wait_dma2 semaphore(%arg5 : memref<!tpu.dma_semaphore, #tpu.memory_space<semaphore_mem>>) src(%7 : memref<1x32xf32, #tpu.memory_space<any>>) dst(%8 : memref<1x32xf32, #tpu.memory_space<vmem>>)
    }
    %c0 = arith.constant 0 : index
    %c0_5 = arith.constant 0 : index
    %3 = vector.load %arg4[%c0, %c0_5] : memref<16x32xf32, #tpu.memory_space<vmem>>, vector<16x32xf32>
    %cst = arith.constant 5.65685415 : f32
    %4 = vector.broadcast %cst : f32 to vector<16x32xf32>
    %5 = arith.mulf %3, %4 : vector<16x32xf32>
    %c0_6 = arith.constant 0 : index
    %c0_7 = arith.constant 0 : index
    %6 = vector.load %arg3[%c0_6, %c0_7] : memref<16x32xf32, #tpu.memory_space<vmem>>, vector<16x32xf32>
    tpu.vector_store %arg3[%c0_6, %c0_7], %5 {strides = array<i32>} : memref<16x32xf32, #tpu.memory_space<vmem>>, vector<16x32xf32>,
    return
  }
  func.func @transform_1(%arg0: i32, %arg1: memref<16xi32, #tpu.memory_space<smem>>) -> (i32, i32) {
    %c0_i32 = arith.constant 0 : i32
    %c0_i32_0 = arith.constant 0 : i32
    return %arg0, %c0_i32 : i32, i32
  }
}

</mosaic_0001>

<llo_original>
// kernel: tpu_custom_call.1
$region0: #{tpu_custom_call.1}
  #allocation0 [shape = 'u32[]', space=smem, size = 0x4, offset = 0x4, fixed_abs, tag = 'smem constant byte address 0x4 - core index']
  #allocation1 [shape = 'u32[144,128]{1,0:T(1,128)}', space=vmem, size = 0x12000, scoped, tag = 'internal scratch']
  #allocation2 [shape = 'f32[16,32]{1,0:T(8,128)}', space=vmem, size = 0x2000, scoped, tag = 'scratch operand']
  #allocation3 [shape = 's32[1]{0}', space=sflag, size = 0x4, scoped, tag = 'scratch operand']
  #allocation4 [shape = 's32[1]{0}', space=sflag, size = 0x4, scoped, tag = 'scoped memory for tpu_custom_call.1']
  #allocation5 [shape = 'u8[512]{0}', space=smem, size = 0x200, scoped, tag = 'prefetched SMEM operand 0']
  #allocation8 [shape = 's32[]', space=sflag, size = 0x4, offset = 0, fixed_abs, tag = 'sflag constant byte address 0x0 - dummy sync flag']
  %s0 = inlined_call_operand.vmem [shape: s32[16], index: 0, kind: input, shape index: {}]
  %s1 = inlined_call_operand.vmem [shape: f32[64,32], index: 1, kind: input, shape index: {}]
  %s2 = inlined_call_operand.hbm [shape: f32[16,32], index: 2, kind: output, shape index: {}]
  %s3 = sld [smem:[#allocation0]]
  $region54: #{tpu_custom_call.1} parent=0
    _
  %s5 = ssub.s32 1, %s3
  %s6 = scalar_select 0, %s5, %s3
  %s7 = sshll.u32 %s0, 4
  %s8 = int_to_ptr.vmem [resolvable:$true] %s7
  %10 = dma.vmem_to_smem %s8, 16, [#allocation5], [#allocation4]
  %11 = dma.done [#allocation4], 16
  %12 = sfence
  $region1: #{tpu_custom_call.1} parent=0
    #allocation6 [shape = 'u8[8192]{0}', space=vmem, size = 0x2000, scoped, tag = 'output window, operand 0, single buffered']
    #allocation7 [shape = 's32[1]{0}', space=sflag, size = 0x4, scoped, tag = 'scoped memory for tpu_custom_call.1']
    %13 = vsyncpa [#allocation7], 0
    %s14 = smul.u32 0, 16
    loop: start=0, step=1, limit=16
    $region2: #{tpu_custom_call.1} parent=1 // loop_pre_header
      _
    $region3: #{tpu_custom_call.1} parent=1 // loop_header
      %s16 = sphi 0, %s20
      %p17 = scmp.ge.s32.totalorder %s16, 16
    $region4: #{tpu_custom_call.1} parent=1 // loop_header_branch
      %19 = sbr.rel (%p17) target = $region8
    $region5: #{tpu_custom_call.1} parent=1 // loop_body
      %s21 = sadd.s32 %s14, %s16
      %s22 = sld [smem:[#allocation5 + %s21]]
      %p23 = scmp.gt.s32.totalorder %s22, 0
      %s24 = scalar_select %p23, %s22, 0
      %p25 = scmp.lt.s32.totalorder %s24, 63
      %s26 = scalar_select %p25, %s24, 63
      %s27 = scalar_lea.vmem %s1, %s26
      %s28 = scalar_lea.vmem [#allocation2], %s16
      %p30 = scmp.lt.u32.totalorder 1, 8
      %p31 = pneg %p30
      // Predicated region
      $region9: #{tpu_custom_call.1} parent=5 // pred_check
        _
      $region10: #{tpu_custom_call.1} parent=5 // pred_check_branch
        %33 = sbr.rel (%p30) target = $region12
      $region11: #{tpu_custom_call.1} parent=5 // pred_region
        %s49 = sand.u32 1, 7
        %p50 = scmp.eq.s32.totalorder %s49, 0
        %p51 = pneg %p50
        // Predicated region
        $region24: #{tpu_custom_call.1} parent=11 // pred_check
          _
        $region25: #{tpu_custom_call.1} parent=11 // pred_check_branch
          %53 = sbr.rel (%p50) target = $region27
        $region26: #{tpu_custom_call.1} parent=11 // pred_region
          %s54 = sand.u32 1, 7
          %s55 = ssub.s32 1, %s54
          %s56 = scalar_lea.vmem %s27, %s55
          %s57 = ssub.s32 1, %s54
          %s58 = scalar_lea.vmem %s28, %s57 [#allocation2]
          %s59 = sshll.u32 1, %s54
          %s60 = ssub.s32 %s59, 1
          loop: start=0, step=1, limit=1
          $region28: #{tpu_custom_call.1} parent=26 // loop_pre_header
            _
          $region29: #{tpu_custom_call.1} parent=26 // loop_header
            %s62 = sphi 0, %s66
            %p63 = scmp.ge.s32.totalorder %s62, 1
            %s67 = sphi %s56, %s56
            %s68 = sphi %s58, %s58
          $region30: #{tpu_custom_call.1} parent=26 // loop_header_branch
            %65 = sbr.rel (%p63) target = $region34
          $region31: #{tpu_custom_call.1} parent=26 // loop_body
            %v69 = vld [vmem:[%s67] sm:%s60]
            %70 = vst [vmem:[%s68] sm:%s60] %v69
          $region32: #{tpu_custom_call.1} parent=26 // loop_footer
            %s66 = sadd.s32 1, %s62
          $region33: #{tpu_custom_call.1} parent=26 // loop_footer_branch
            %61 = sbr.rel target = $region29
          $region34: #{tpu_custom_call.1} parent=26 // loop_exit
            _
        $region27: #{tpu_custom_call.1} parent=11 // pred_fallthru
          _
      $region12: #{tpu_custom_call.1} parent=5 // pred_fallthru
        _
      // Predicated region
      $region13: #{tpu_custom_call.1} parent=5 // pred_check
        %p34 = pneg %p30
      $region14: #{tpu_custom_call.1} parent=5 // pred_check_branch
        %36 = sbr.rel (%p34) target = $region16
      $region15: #{tpu_custom_call.1} parent=5 // pred_region
        %s37 = sshll.u32 1, 1
        %s38 = ssub.s32 %s37, 1
        loop: start=0, step=1, limit=1
        $region17: #{tpu_custom_call.1} parent=15 // loop_pre_header
          _
        $region18: #{tpu_custom_call.1} parent=15 // loop_header
          %s40 = sphi 0, %s44
          %p41 = scmp.ge.s32.totalorder %s40, 1
          %s45 = sphi %s27, %s27
          %s46 = sphi %s28, %s28
        $region19: #{tpu_custom_call.1} parent=15 // loop_header_branch
          %43 = sbr.rel (%p41) target = $region23
        $region20: #{tpu_custom_call.1} parent=15 // loop_body
          %v47 = vld [vmem:[%s45] sm:%s38]
          %48 = vst [vmem:[%s46] sm:%s38] %v47
        $region21: #{tpu_custom_call.1} parent=15 // loop_footer
          %s44 = sadd.s32 1, %s40
        $region22: #{tpu_custom_call.1} parent=15 // loop_footer_branch
          %39 = sbr.rel target = $region18
        $region23: #{tpu_custom_call.1} parent=15 // loop_exit
          _
      $region16: #{tpu_custom_call.1} parent=5 // pred_fallthru
        _
      // Predicated region
      $region35: #{tpu_custom_call.1} parent=5 // pred_check
        _
      $region36: #{tpu_custom_call.1} parent=5 // pred_check_branch
        %73 = sbr.rel (0) target = $region38
      $region37: #{tpu_custom_call.1} parent=5 // pred_region
        %74 = vsyncadd [#allocation3], 16
      $region38: #{tpu_custom_call.1} parent=5 // pred_fallthru
        _
    $region6: #{tpu_custom_call.1} parent=1 // loop_footer
      %s20 = sadd.s32 1, %s16
    $region7: #{tpu_custom_call.1} parent=1 // loop_footer_branch
      %15 = sbr.rel target = $region3
    $region8: #{tpu_custom_call.1} parent=1 // loop_exit
      _
    loop: start=0, step=1, limit=16
    $region39: #{tpu_custom_call.1} parent=1 // loop_pre_header
      _
    $region40: #{tpu_custom_call.1} parent=1 // loop_header
      %s76 = sphi 0, %s80
      %p77 = scmp.ge.s32.totalorder %s76, 16
    $region41: #{tpu_custom_call.1} parent=1 // loop_header_branch
      %79 = sbr.rel (%p77) target = $region45
    $region42: #{tpu_custom_call.1} parent=1 // loop_body
      %s81 = smul.u32 1, 1
      %s82 = sshll.u32 %s81, 4
      %83 = dma.done [#allocation3], %s82
    $region43: #{tpu_custom_call.1} parent=1 // loop_footer
      %s80 = sadd.s32 1, %s76
    $region44: #{tpu_custom_call.1} parent=1 // loop_footer_branch
      %75 = sbr.rel target = $region40
    $region45: #{tpu_custom_call.1} parent=1 // loop_exit
      _
    %v84 = vld [vmem:[#allocation2] sm:$0xff]
    %v85 = vld [vmem:[#allocation2 + $0x8] sm:$0xff]
    %v86 = vmul.f32 %v84, 5.656854
    %v87 = vmul.f32 %v85, 5.656854
    %vm88 = vcmask 261120
    %89 = vst.msk [vmem:[#allocation6] sm:$0xff] %vm88, %v86
    %90 = vst.msk [vmem:[#allocation6 + $0x8] sm:$0xff] %vm88, %v87
    // Predicated region
    $region46: #{tpu_custom_call.1} parent=1 // pred_check
      _
    $region47: #{tpu_custom_call.1} parent=1 // pred_check_branch
      %92 = sbr.rel (0) target = $region49
    $region48: #{tpu_custom_call.1} parent=1 // pred_region
      %s94 = ssub.s32 256, 256
      %95 = vsyncadd [#allocation7], %s94
      %s96 = sshll.u32 [#allocation6], 4
      %s97 = int_to_ptr.vmem [resolvable:$true] %s96
      %102 = dma.vmem_to_hbm [thread:$0]  %s97, 256, %s2, [#allocation7], 128, 128, 8
    $region49: #{tpu_custom_call.1} parent=1 // pred_fallthru
      _
    // Predicated region
    $region50: #{tpu_custom_call.1} parent=1 // pred_check
      _
    $region51: #{tpu_custom_call.1} parent=1 // pred_check_branch
      %104 = sbr.rel (0) target = $region53
    $region52: #{tpu_custom_call.1} parent=1 // pred_region
      %105 = dma.done [#allocation7], 256
    $region53: #{tpu_custom_call.1} parent=1 // pred_fallthru
      _
    %106 = vsyncpa [#allocation7], 1
  %107 = vsyncmov [#allocation3]
  %s108 = vpop.sfrf %107
  %p109 = scmp.eq.s32.totalorder %s108, 0
  %p110 = pneg %p109
  %112 = shalt.err (%p110)

</llo_original>
